<compile_context>
chip_gen: v7x
topology: tpu7x:2x2x1
jax: 0.10.0
libtpu: 0.0.40
codegen_flags: <defaults>
</compile_context>

<pallas_src>
import jax
import jax.numpy as jnp
from jax.experimental import pallas as pl
from jax.experimental.pallas import tpu as pltpu


def _round_up(x, m):
    return (x + m - 1) // m * m


def _mlp_head(uni_f, w1_ref, b1_ref, w2_ref, b2_ref, out_ref):
    # linear1 + ReLU: bf16 inputs on the MXU, f32 accumulation, f32 bias add.
    h = jnp.dot(uni_f.astype(w1_ref.dtype), w1_ref[...],
                preferred_element_type=jnp.float32)
    h = jnp.maximum(h + b1_ref[...], 0.0)
    # linear2: activation intentionally downcast to the weight dtype (bf16) so
    # the MXU runs at native rate; accumulation stays f32.
    out = jnp.dot(h.astype(w2_ref.dtype), w2_ref[...],
                  preferred_element_type=jnp.float32)
    out_ref[...] = (out + b2_ref[...]).astype(out_ref.dtype)


def _vqa_head_kernel_kge(i_f_ref, q_f_ref, e1_ref, e2_ref,
                         w1_ref, b1_ref, w2_ref, b2_ref, out_ref):
    # Same multiply order as the PyTorch reference: (emb1*emb2) * (i_f*q_f).
    embed = e1_ref[...] * e2_ref[...]
    uni_f = embed * (i_f_ref[...] * q_f_ref[...])
    _mlp_head(uni_f, w1_ref, b1_ref, w2_ref, b2_ref, out_ref)


def _vqa_head_kernel_nokge(i_f_ref, q_f_ref,
                           w1_ref, b1_ref, w2_ref, b2_ref, out_ref):
    uni_f = i_f_ref[...] * q_f_ref[...]
    _mlp_head(uni_f, w1_ref, b1_ref, w2_ref, b2_ref, out_ref)


def vqa_head(i_f, q_f, w1, b1, w2, b2, emb1=None, emb2=None, *,
             use_kge=True, compute_dtype=jnp.bfloat16,
             out_dtype=jnp.float32, batch_tile=128):
    """Fusion head of VQAModel.forward (dropout = identity, inference mode).

    Weights are stored as (in_features, out_features) so the kernel computes
    x @ W + b (equivalent to PyTorch's x @ W.T with W stored (out, in)).
    """
    B, dim_i = i_f.shape
    assert q_f.shape == (B, dim_i), (q_f.shape, (B, dim_i))
    dim_h = w1.shape[1]
    num_target = w2.shape[1]
    assert w1.shape == (dim_i, dim_h)
    assert w2.shape == (dim_h, num_target)
    assert b1.size == dim_h and b2.size == num_target

    # Static branch: the non-KGE variant never touches emb refs at all.
    use_kge = bool(use_kge) and emb1 is not None and emb2 is not None

    cd = compute_dtype

    # Batch tiling: pad B up to a multiple of the (8-aligned) batch tile so the
    # block sublane dim is legal; weights stay resident across batch tiles.
    tb = min(batch_tile, _round_up(B, 8))
    tb = _round_up(tb, 8)
    B_pad = _round_up(B, tb)
    nb = B_pad // tb

    def pad_batch(x):
        if B_pad == B:
            return x
        return jnp.pad(x, ((0, B_pad - B), (0, 0)))

    i_f_c = pad_batch(i_f.astype(cd))
    q_f_c = pad_batch(q_f.astype(cd))

    # Weights in bf16 (halves the dominant HBM->VMEM DMA); biases stay f32.
    w1_c = w1.astype(cd)
    w2_c = w2.astype(cd)
    b1_2d = jnp.reshape(b1, (1, dim_h)).astype(jnp.float32)
    b2_2d = jnp.reshape(b2, (1, num_target)).astype(jnp.float32)

    # Batch-streamed activations / output; weights & biases resident (block
    # index constant across the grid => fetched once, reused every tile).
    act_spec = pl.BlockSpec((tb, dim_i), lambda b: (b, 0))
    out_spec = pl.BlockSpec((tb, num_target), lambda b: (b, 0))
    w1_spec = pl.BlockSpec((dim_i, dim_h), lambda b: (0, 0))
    b1_spec = pl.BlockSpec((1, dim_h), lambda b: (0, 0))
    w2_spec = pl.BlockSpec((dim_h, num_target), lambda b: (0, 0))
    b2_spec = pl.BlockSpec((1, num_target), lambda b: (0, 0))

    if use_kge:
        # .squeeze() in the reference collapses singleton dims -> (B, dim_i).
        assert emb1.size == B * dim_i, (emb1.shape, (B, dim_i))
        assert emb2.size == B * dim_i, (emb2.shape, (B, dim_i))
        e1_c = pad_batch(jnp.reshape(emb1, (B, dim_i)).astype(cd))
        e2_c = pad_batch(jnp.reshape(emb2, (B, dim_i)).astype(cd))
        kernel = _vqa_head_kernel_kge
        in_specs = [act_spec, act_spec, act_spec, act_spec,
                    w1_spec, b1_spec, w2_spec, b2_spec]
        args = (i_f_c, q_f_c, e1_c, e2_c, w1_c, b1_2d, w2_c, b2_2d)
        n_act = 4
    else:
        kernel = _vqa_head_kernel_nokge
        in_specs = [act_spec, act_spec, w1_spec, b1_spec, w2_spec, b2_spec]
        args = (i_f_c, q_f_c, w1_c, b1_2d, w2_c, b2_2d)
        n_act = 2

    # Advisory cost hint so XLA can overlap this tiny call with backbone ops.
    cd_bytes = jnp.dtype(cd).itemsize
    bytes_accessed = (
        n_act * B_pad * dim_i * cd_bytes                      # activations
        + (dim_i * dim_h + dim_h * num_target) * cd_bytes     # weights
        + (dim_h + num_target) * 4                            # biases (f32)
        + B_pad * num_target * jnp.dtype(out_dtype).itemsize  # output
    )
    cost = pl.CostEstimate(
        flops=2 * B_pad * dim_h * (dim_i + num_target),
        transcendentals=0,
        bytes_accessed=bytes_accessed,
    )

    out = pl.pallas_call(
        kernel,
        out_shape=jax.ShapeDtypeStruct((B_pad, num_target), out_dtype),
        grid_spec=pltpu.PrefetchScalarGridSpec(
            num_scalar_prefetch=0,
            grid=(nb,),
            in_specs=in_specs,
            out_specs=out_spec,
        ),
        compiler_params=pltpu.CompilerParams(
            dimension_semantics=("parallel",),
        ),
        cost_estimate=cost,
    )(*args)

    if B_pad != B:
        out = out[:B]
    return out


def _ref_forward(i_f, q_f, emb1, emb2, w1, b1, w2, b2, *,
                 use_kge=True, compute_dtype=jnp.bfloat16):
    """Precision-matched JAX reference (same casts / f32 accumulation)."""
    cd = compute_dtype
    iq = i_f.astype(cd) * q_f.astype(cd)
    if use_kge:
        uni = (emb1.astype(cd) * emb2.astype(cd)) * iq
    else:
        uni = iq
    h = jnp.dot(uni, w1.astype(cd), preferred_element_type=jnp.float32)
    h = jnp.maximum(h + b1.astype(jnp.float32), 0.0)
    out = jnp.dot(h.astype(cd), w2.astype(cd),
                  preferred_element_type=jnp.float32)
    return out + b2.astype(jnp.float32)


if __name__ == "__main__":
    # Small shapes consistent with the forward: batch=8, dim_i=256 (shared
    # text/image feature dim, since i_f * q_f requires equal dims),
    # dim_h=512, num_target=128 (lane-dense output).
    B, dim_i, dim_h, num_target = 8, 256, 512, 128

    key = jax.random.PRNGKey(0)
    keys = jax.random.split(key, 8)
    i_f = jax.random.normal(keys[0], (B, dim_i), dtype=jnp.float32)
    q_f = jax.random.normal(keys[1], (B, dim_i), dtype=jnp.float32)
    emb1 = jax.random.normal(keys[2], (B, 1, dim_i), dtype=jnp.float32)  # squeezed
    emb2 = jax.random.normal(keys[3], (B, 1, dim_i), dtype=jnp.float32)
    # Synthetic params (shapes from nn.Linear(dim_i,dim_h) / nn.Linear(dim_h,
    # num_target)), stored (in, out).
    w1 = jax.random.normal(keys[4], (dim_i, dim_h), dtype=jnp.float32) * 0.02
    b1 = jax.random.normal(keys[5], (dim_h,), dtype=jnp.float32) * 0.02
    w2 = jax.random.normal(keys[6], (dim_h, num_target), dtype=jnp.float32) * 0.02
    b2 = jax.random.normal(keys[7], (num_target,), dtype=jnp.float32) * 0.02

    emb1_2d = emb1.reshape(B, dim_i)
    emb2_2d = emb2.reshape(B, dim_i)

    # use_kge=True path.
    out = vqa_head(i_f, q_f, w1, b1, w2, b2, emb1, emb2, use_kge=True)
    out = jax.block_until_ready(out)
    ref = _ref_forward(i_f, q_f, emb1_2d, emb2_2d, w1, b1, w2, b2,
                       use_kge=True, compute_dtype=jnp.bfloat16)
    assert out.shape == (B, num_target)
    assert jnp.allclose(out, ref, atol=2e-3, rtol=2e-2), \
        "kge path mismatch vs precision-matched JAX reference"

    # use_kge=False path (separate kernel variant: no emb refs, no dummy ones).
    out_nk = vqa_head(i_f, q_f, w1, b1, w2, b2, use_kge=False)
    out_nk = jax.block_until_ready(out_nk)
    ref_nk = _ref_forward(i_f, q_f, emb1_2d, emb2_2d, w1, b1, w2, b2,
                          use_kge=False, compute_dtype=jnp.bfloat16)
    assert out_nk.shape == (B, num_target)
    assert jnp.allclose(out_nk, ref_nk, atol=2e-3, rtol=2e-2), \
        "no-kge path mismatch vs precision-matched JAX reference"

    print("KERNEL_OK")
</pallas_src>

<mosaic_0001>
module attributes {stable_mosaic.version = 11 : i64} {
  func.func @_vqa_head_kernel_kge(%arg0: i32, %arg1: memref<8x256xbf16, #tpu.memory_space<vmem>>, %arg2: memref<8x256xbf16, #tpu.memory_space<vmem>>, %arg3: memref<8x256xbf16, #tpu.memory_space<vmem>>, %arg4: memref<8x256xbf16, #tpu.memory_space<vmem>>, %arg5: memref<256x512xbf16, #tpu.memory_space<vmem>>, %arg6: memref<1x512xf32, #tpu.memory_space<vmem>>, %arg7: memref<512x128xbf16, #tpu.memory_space<vmem>>, %arg8: memref<1x128xf32, #tpu.memory_space<vmem>>, %arg9: memref<8x128xf32, #tpu.memory_space<vmem>>) attributes {dimension_semantics = [#tpu.dimension_semantics<parallel>], iteration_bounds = array<i64: 1>, scalar_prefetch = 0 : i64, scratch_operands = 0 : i64, tpu.core_type = #tpu.core_type<tc>, window_params = [{transform_indices = @transform_0, window_bounds = array<i64: 8, 256>}, {transform_indices = @transform_1, window_bounds = array<i64: 8, 256>}, {transform_indices = @transform_2, window_bounds = array<i64: 8, 256>}, {transform_indices = @transform_3, window_bounds = array<i64: 8, 256>}, {pipeline_mode = #tpu.pipeline_mode<synchronous>, transform_indices = @transform_4, window_bounds = array<i64: 256, 512>}, {pipeline_mode = #tpu.pipeline_mode<synchronous>, transform_indices = @transform_5, window_bounds = array<i64: 1, 512>}, {pipeline_mode = #tpu.pipeline_mode<synchronous>, transform_indices = @transform_6, window_bounds = array<i64: 512, 128>}, {pipeline_mode = #tpu.pipeline_mode<synchronous>, transform_indices = @transform_7, window_bounds = array<i64: 1, 128>}, {transform_indices = @transform_8, window_bounds = array<i64: 8, 128>}]} {
    %c0 = arith.constant 0 : index
    %c0_0 = arith.constant 0 : index
    %0 = vector.load %arg3[%c0, %c0_0] : memref<8x256xbf16, #tpu.memory_space<vmem>>, vector<8x256xbf16>
    %c0_1 = arith.constant 0 : index
    %c0_2 = arith.constant 0 : index
    %1 = vector.load %arg4[%c0_1, %c0_2] : memref<8x256xbf16, #tpu.memory_space<vmem>>, vector<8x256xbf16>
    %2 = arith.mulf %0, %1 : vector<8x256xbf16>
    %c0_3 = arith.constant 0 : index
    %c0_4 = arith.constant 0 : index
    %3 = vector.load %arg1[%c0_3, %c0_4] : memref<8x256xbf16, #tpu.memory_space<vmem>>, vector<8x256xbf16>
    %c0_5 = arith.constant 0 : index
    %c0_6 = arith.constant 0 : index
    %4 = vector.load %arg2[%c0_5, %c0_6] : memref<8x256xbf16, #tpu.memory_space<vmem>>, vector<8x256xbf16>
    %5 = arith.mulf %3, %4 : vector<8x256xbf16>
    %6 = arith.mulf %2, %5 : vector<8x256xbf16>
    %c0_7 = arith.constant 0 : index
    %c0_8 = arith.constant 0 : index
    %7 = vector.load %arg5[%c0_7, %c0_8] : memref<256x512xbf16, #tpu.memory_space<vmem>>, vector<256x512xbf16>
    %cst = arith.constant dense<0.000000e+00> : vector<8x512xf32>
    %8 = tpu.matmul %6, %7, %cst {dimension_numbers = #tpu.dot_dimension_numbers<[1], [0], [0], [1], [0, 0, 1, 1], [], []>} : vector<8x256xbf16>, vector<256x512xbf16>, vector<8x512xf32> -> vector<8x512xf32>
    %c0_9 = arith.constant 0 : index
    %c0_10 = arith.constant 0 : index
    %9 = vector.load %arg6[%c0_9, %c0_10] : memref<1x512xf32, #tpu.memory_space<vmem>>, vector<1x512xf32>
    %10 = vector.broadcast %9 : vector<1x512xf32> to vector<8x512xf32>
    %11 = arith.addf %8, %10 : vector<8x512xf32>
    %cst_11 = arith.constant 0.000000e+00 : f32
    %12 = vector.broadcast %cst_11 : f32 to vector<8x512xf32>
    %13 = arith.maximumf %11, %12 : vector<8x512xf32>
    %14 = arith.truncf %13 : vector<8x512xf32> to vector<8x512xbf16>
    %c0_12 = arith.constant 0 : index
    %c0_13 = arith.constant 0 : index
    %15 = vector.load %arg7[%c0_12, %c0_13] : memref<512x128xbf16, #tpu.memory_space<vmem>>, vector<512x128xbf16>
    %cst_14 = arith.constant dense<0.000000e+00> : vector<8x128xf32>
    %16 = tpu.matmul %14, %15, %cst_14 {dimension_numbers = #tpu.dot_dimension_numbers<[1], [0], [0], [1], [0, 0, 1, 1], [], []>} : vector<8x512xbf16>, vector<512x128xbf16>, vector<8x128xf32> -> vector<8x128xf32>
    %c0_15 = arith.constant 0 : index
    %c0_16 = arith.constant 0 : index
    %17 = vector.load %arg8[%c0_15, %c0_16] : memref<1x128xf32, #tpu.memory_space<vmem>>, vector<1x128xf32>
    %18 = vector.broadcast %17 : vector<1x128xf32> to vector<8x128xf32>
    %19 = arith.addf %16, %18 : vector<8x128xf32>
    %c0_17 = arith.constant 0 : index
    %c0_18 = arith.constant 0 : index
    %20 = vector.load %arg9[%c0_17, %c0_18] : memref<8x128xf32, #tpu.memory_space<vmem>>, vector<8x128xf32>
    tpu.vector_store %arg9[%c0_17, %c0_18], %19 {strides = array<i32>} : memref<8x128xf32, #tpu.memory_space<vmem>>, vector<8x128xf32>,
    return
  }
  func.func @transform_0(%arg0: i32) -> (i32, i32) {
    %c0_i32 = arith.constant 0 : i32
    %c0_i32_0 = arith.constant 0 : i32
    return %arg0, %c0_i32 : i32, i32
  }
  func.func @transform_1(%arg0: i32) -> (i32, i32) {
    %c0_i32 = arith.constant 0 : i32
    %c0_i32_0 = arith.constant 0 : i32
    return %arg0, %c0_i32 : i32, i32
  }
  func.func @transform_2(%arg0: i32) -> (i32, i32) {
    %c0_i32 = arith.constant 0 : i32
    %c0_i32_0 = arith.constant 0 : i32
    return %arg0, %c0_i32 : i32, i32
  }
  func.func @transform_3(%arg0: i32) -> (i32, i32) {
    %c0_i32 = arith.constant 0 : i32
    %c0_i32_0 = arith.constant 0 : i32
    return %arg0, %c0_i32 : i32, i32
  }
  func.func @transform_4(%arg0: i32) -> (i32, i32) {
    %c0_i32 = arith.constant 0 : i32
    %c0_i32_0 = arith.constant 0 : i32
    %c0_i32_1 = arith.constant 0 : i32
    return %c0_i32, %c0_i32_0 : i32, i32
  }
  func.func @transform_5(%arg0: i32) -> (i32, i32) {
    %c0_i32 = arith.constant 0 : i32
    %c0_i32_0 = arith.constant 0 : i32
    %c0_i32_1 = arith.constant 0 : i32
    return %c0_i32, %c0_i32_0 : i32, i32
  }
  func.func @transform_6(%arg0: i32) -> (i32, i32) {
    %c0_i32 = arith.constant 0 : i32
    %c0_i32_0 = arith.constant 0 : i32
    %c0_i32_1 = arith.constant 0 : i32
    return %c0_i32, %c0_i32_0 : i32, i32
  }
  func.func @transform_7(%arg0: i32) -> (i32, i32) {
    %c0_i32 = arith.constant 0 : i32
    %c0_i32_0 = arith.constant 0 : i32
    %c0_i32_1 = arith.constant 0 : i32
    return %c0_i32, %c0_i32_0 : i32, i32
  }
  func.func @transform_8(%arg0: i32) -> (i32, i32) {
    %c0_i32 = arith.constant 0 : i32
    %c0_i32_0 = arith.constant 0 : i32
    return %arg0, %c0_i32 : i32, i32
  }
}

</mosaic_0001>

<llo_original>
// kernel: tpu_custom_call.1
$region0: #{tpu_custom_call.1}
  #allocation0 [shape = 'u32[]', space=smem, size = 0x4, offset = 0x4, fixed_abs, tag = 'smem constant byte address 0x4 - core index']
  #allocation1 [shape = 'u32[144,128]{1,0:T(1,128)}', space=vmem, size = 0x12000, scoped, tag = 'internal scratch']
  %s0 = inlined_call_operand.hbm [shape: bf16[8,256], index: 0, kind: input, shape index: {}]
  %s1 = inlined_call_operand.hbm [shape: bf16[8,256], index: 1, kind: input, shape index: {}]
  %s2 = inlined_call_operand.hbm [shape: bf16[8,256], index: 2, kind: input, shape index: {}]
  %s3 = inlined_call_operand.vmem [shape: bf16[8,256], index: 3, kind: input, shape index: {}]
  %s4 = inlined_call_operand.hbm [shape: bf16[256,512], index: 4, kind: input, shape index: {}]
  %s5 = inlined_call_operand.vmem [shape: f32[1,512], index: 5, kind: input, shape index: {}]
  %s6 = inlined_call_operand.hbm [shape: bf16[512,128], index: 6, kind: input, shape index: {}]
  %s7 = inlined_call_operand.vmem [shape: f32[1,128], index: 7, kind: input, shape index: {}]
  %s8 = inlined_call_operand.hbm [shape: f32[8,128], index: 8, kind: output, shape index: {}]
  %s9 = sld [smem:[#allocation0]]
  $region62: #{tpu_custom_call.1} parent=0
    _
  %s11 = ssub.s32 1, %s9
  %s12 = scalar_select 0, %s11, %s9
  $region1: #{tpu_custom_call.1} parent=0
    #allocation2 [shape = 'u8[4096]{0}', space=vmem, size = 0x1000, scoped, tag = 'input window, operand 0, single buffered']
    #allocation3 [shape = 's32[1]{0}', space=sflag, size = 0x4, scoped, tag = 'scoped memory for tpu_custom_call.1']
    #allocation4 [shape = 's32[1]{0}', space=sflag, size = 0x4, scoped, tag = 'scoped memory for tpu_custom_call.1']
    #allocation5 [shape = 'u8[4096]{0}', space=vmem, size = 0x1000, scoped, tag = 'input window, operand 1, single buffered']
    #allocation6 [shape = 's32[1]{0}', space=sflag, size = 0x4, scoped, tag = 'scoped memory for tpu_custom_call.1']
    #allocation7 [shape = 'u8[4096]{0}', space=vmem, size = 0x1000, scoped, tag = 'input window, operand 2, single buffered']
    #allocation8 [shape = 'u8[262144]{0}', space=vmem, size = 0x40000, scoped, tag = 'input window, operand 4, single buffered']
    #allocation9 [shape = 's32[1]{0}', space=sflag, size = 0x4, scoped, tag = 'scoped memory for tpu_custom_call.1']
    #allocation10 [shape = 'u8[131072]{0}', space=vmem, size = 0x20000, scoped, tag = 'input window, operand 6, single buffered']
    #allocation11 [shape = 'u8[4096]{0}', space=vmem, size = 0x1000, scoped, tag = 'output window, operand 0, single buffered']
    %13 = vsyncpa [#allocation3], 0
    %14 = vsyncpa [#allocation6], 0
    %15 = vsyncpa [#allocation9], 0
    %16 = vsyncpa [#allocation4], 0
    // Predicated region
    $region2: #{tpu_custom_call.1} parent=1 // pred_check
      _
    $region3: #{tpu_custom_call.1} parent=1 // pred_check_branch
      %18 = sbr.rel (0) target = $region5
    $region4: #{tpu_custom_call.1} parent=1 // pred_region
      %s20 = ssub.s32 128, 128
      %21 = vsyncadd [#allocation3], %s20
      %s23 = sshll.u32 [#allocation2], 4
      %s24 = int_to_ptr.vmem [resolvable:$true] %s23
      %26 = dma.hbm_to_vmem [thread:$0]  %s0, 128, %s24, [#allocation3]
    $region5: #{tpu_custom_call.1} parent=1 // pred_fallthru
      _
    // Predicated region
    $region6: #{tpu_custom_call.1} parent=1 // pred_check
      _
    $region7: #{tpu_custom_call.1} parent=1 // pred_check_branch
      %28 = sbr.rel (0) target = $region9
    $region8: #{tpu_custom_call.1} parent=1 // pred_region
      %s30 = ssub.s32 128, 128
      %31 = vsyncadd [#allocation6], %s30
      %s33 = sshll.u32 [#allocation5], 4
      %s34 = int_to_ptr.vmem [resolvable:$true] %s33
      %36 = dma.hbm_to_vmem [thread:$0]  %s1, 128, %s34, [#allocation6]
    $region9: #{tpu_custom_call.1} parent=1 // pred_fallthru
      _
    // Predicated region
    $region10: #{tpu_custom_call.1} parent=1 // pred_check
      _
    $region11: #{tpu_custom_call.1} parent=1 // pred_check_branch
      %38 = sbr.rel (0) target = $region13
    $region12: #{tpu_custom_call.1} parent=1 // pred_region
      %s40 = ssub.s32 128, 128
      %41 = vsyncadd [#allocation6], %s40
      %s43 = sshll.u32 [#allocation7], 4
      %s44 = int_to_ptr.vmem [resolvable:$true] %s43
      %46 = dma.hbm_to_vmem [thread:$0]  %s2, 128, %s44, [#allocation6]
    $region13: #{tpu_custom_call.1} parent=1 // pred_fallthru
      _
    // Predicated region
    $region14: #{tpu_custom_call.1} parent=1 // pred_check
      _
    $region15: #{tpu_custom_call.1} parent=1 // pred_check_branch
      %48 = sbr.rel (0) target = $region17
    $region16: #{tpu_custom_call.1} parent=1 // pred_region
      _
    $region17: #{tpu_custom_call.1} parent=1 // pred_fallthru
      _
    // Predicated region
    $region18: #{tpu_custom_call.1} parent=1 // pred_check
      _
    $region19: #{tpu_custom_call.1} parent=1 // pred_check_branch
      %50 = sbr.rel (0) target = $region21
    $region20: #{tpu_custom_call.1} parent=1 // pred_region
      %s52 = ssub.s32 8192, 8192
      %53 = vsyncadd [#allocation9], %s52
      %s54 = sshll.u32 [#allocation8], 4
      %s55 = int_to_ptr.vmem [resolvable:$true] %s54
      %60 = dma.hbm_to_vmem [thread:$0]  %s4, 8192, %s55, [#allocation9], 256, 256, 16
    $region21: #{tpu_custom_call.1} parent=1 // pred_fallthru
      _
    // Predicated region
    $region22: #{tpu_custom_call.1} parent=1 // pred_check
      _
    $region23: #{tpu_custom_call.1} parent=1 // pred_check_branch
      %62 = sbr.rel (0) target = $region25
    $region24: #{tpu_custom_call.1} parent=1 // pred_region
      _
    $region25: #{tpu_custom_call.1} parent=1 // pred_fallthru
      _
    // Predicated region
    $region26: #{tpu_custom_call.1} parent=1 // pred_check
      _
    $region27: #{tpu_custom_call.1} parent=1 // pred_check_branch
      %64 = sbr.rel (0) target = $region29
    $region28: #{tpu_custom_call.1} parent=1 // pred_region
      %s66 = ssub.s32 4096, 4096
      %67 = vsyncadd [#allocation9], %s66
      %s68 = sshll.u32 [#allocation10], 4
      %s69 = int_to_ptr.vmem [resolvable:$true] %s68
      %74 = dma.hbm_to_vmem [thread:$0]  %s6, 4096, %s69, [#allocation9], 64, 64, 4
    $region29: #{tpu_custom_call.1} parent=1 // pred_fallthru
      _
    // Predicated region
    $region30: #{tpu_custom_call.1} parent=1 // pred_check
      _
    $region31: #{tpu_custom_call.1} parent=1 // pred_check_branch
      %76 = sbr.rel (0) target = $region33
    $region32: #{tpu_custom_call.1} parent=1 // pred_region
      _
    $region33: #{tpu_custom_call.1} parent=1 // pred_fallthru
      _
    // Predicated region
    $region34: #{tpu_custom_call.1} parent=1 // pred_check
      _
    $region35: #{tpu_custom_call.1} parent=1 // pred_check_branch
      %78 = sbr.rel (0) target = $region37
    $region36: #{tpu_custom_call.1} parent=1 // pred_region
      %79 = dma.done [#allocation3], 128
    $region37: #{tpu_custom_call.1} parent=1 // pred_fallthru
      _
    // Predicated region
    $region38: #{tpu_custom_call.1} parent=1 // pred_check
      _
    $region39: #{tpu_custom_call.1} parent=1 // pred_check_branch
      %81 = sbr.rel (0) target = $region41
    $region40: #{tpu_custom_call.1} parent=1 // pred_region
      %82 = dma.done [#allocation6], 128
    $region41: #{tpu_custom_call.1} parent=1 // pred_fallthru
      _
    // Predicated region
    $region42: #{tpu_custom_call.1} parent=1 // pred_check
      _
    $region43: #{tpu_custom_call.1} parent=1 // pred_check_branch
      %84 = sbr.rel (0) target = $region45
    $region44: #{tpu_custom_call.1} parent=1 // pred_region
      %85 = dma.done [#allocation6], 128
    $region45: #{tpu_custom_call.1} parent=1 // pred_fallthru
      _
    // Predicated region
    $region46: #{tpu_custom_call.1} parent=1 // pred_check
      _
    $region47: #{tpu_custom_call.1} parent=1 // pred_check_branch
      %87 = sbr.rel (0) target = $region49
    $region48: #{tpu_custom_call.1} parent=1 // pred_region
      %88 = dma.done [#allocation9], 8192
    $region49: #{tpu_custom_call.1} parent=1 // pred_fallthru
      _
    // Predicated region
    $region50: #{tpu_custom_call.1} parent=1 // pred_check
      _
    $region51: #{tpu_custom_call.1} parent=1 // pred_check_branch
      %90 = sbr.rel (0) target = $region53
    $region52: #{tpu_custom_call.1} parent=1 // pred_region
      %91 = dma.done [#allocation9], 4096
    $region53: #{tpu_custom_call.1} parent=1 // pred_fallthru
      _
    %v93 = vld [vmem:[#allocation7] sm:$0xff]
    %v94 = vld [vmem:[%s3] sm:$0xff]
    %v95 = vmul.bf16 %v93, %v94
    %v96 = vld [vmem:[#allocation2] sm:$0xff]
    %v97 = vld [vmem:[#allocation5] sm:$0xff]
    %v98 = vmul.bf16 %v96, %v97
    %v99 = vmul.bf16 %v95, %v98
    %v100 = vld [vmem:[#allocation8] sm:$0xff]
    %v101 = vld [vmem:[#allocation8 + $0x8] sm:$0xff]
    %v102 = vld [vmem:[#allocation8 + $0x10] sm:$0xff]
    %v103 = vld [vmem:[#allocation8 + $0x18] sm:$0xff]
    %v104 = vld [vmem:[#allocation8 + $0x20] sm:$0xff]
    %v105 = vld [vmem:[#allocation8 + $0x28] sm:$0xff]
    %v106 = vld [vmem:[#allocation8 + $0x30] sm:$0xff]
    %v107 = vld [vmem:[#allocation8 + $0x38] sm:$0xff]
    %v108 = vld [vmem:[#allocation8 + $0x40] sm:$0xff]
    %v109 = vld [vmem:[#allocation8 + $0x48] sm:$0xff]
    %v110 = vld [vmem:[#allocation8 + $0x50] sm:$0xff]
    %v111 = vld [vmem:[#allocation8 + $0x58] sm:$0xff]
    %v112 = vld [vmem:[#allocation8 + $0x60] sm:$0xff]
    %v113 = vld [vmem:[#allocation8 + $0x68] sm:$0xff]
    %v114 = vld [vmem:[#allocation8 + $0x70] sm:$0xff]
    %v115 = vld [vmem:[#allocation8 + $0x78] sm:$0xff]
    %v116 = vld [vmem:[#allocation8 + $0x80] sm:$0xff]
    %v117 = vld [vmem:[#allocation8 + $0x88] sm:$0xff]
    %v118 = vld [vmem:[#allocation8 + $0x90] sm:$0xff]
    %v119 = vld [vmem:[#allocation8 + $0x98] sm:$0xff]
    %v120 = vld [vmem:[#allocation8 + $0xa0] sm:$0xff]
    %v121 = vld [vmem:[#allocation8 + $0xa8] sm:$0xff]
    %v122 = vld [vmem:[#allocation8 + $0xb0] sm:$0xff]
    %v123 = vld [vmem:[#allocation8 + $0xb8] sm:$0xff]
    %v124 = vld [vmem:[#allocation8 + $0xc0] sm:$0xff]
    %v125 = vld [vmem:[#allocation8 + $0xc8] sm:$0xff]
    %v126 = vld [vmem:[#allocation8 + $0xd0] sm:$0xff]
    %v127 = vld [vmem:[#allocation8 + $0xd8] sm:$0xff]
    %v128 = vld [vmem:[#allocation8 + $0xe0] sm:$0xff]
    %v129 = vld [vmem:[#allocation8 + $0xe8] sm:$0xff]
    %v130 = vld [vmem:[#allocation8 + $0xf0] sm:$0xff]
    %v131 = vld [vmem:[#allocation8 + $0xf8] sm:$0xff]
    %v132 = vld [vmem:[#allocation8 + $0x100] sm:$0xff]
    %v133 = vld [vmem:[#allocation8 + $0x108] sm:$0xff]
    %v134 = vld [vmem:[#allocation8 + $0x110] sm:$0xff]
    %v135 = vld [vmem:[#allocation8 + $0x118] sm:$0xff]
    %v136 = vld [vmem:[#allocation8 + $0x120] sm:$0xff]
    %v137 = vld [vmem:[#allocation8 + $0x128] sm:$0xff]
    %v138 = vld [vmem:[#allocation8 + $0x130] sm:$0xff]
    %v139 = vld [vmem:[#allocation8 + $0x138] sm:$0xff]
    %v140 = vld [vmem:[#allocation8 + $0x140] sm:$0xff]
    %v141 = vld [vmem:[#allocation8 + $0x148] sm:$0xff]
    %v142 = vld [vmem:[#allocation8 + $0x150] sm:$0xff]
    %v143 = vld [vmem:[#allocation8 + $0x158] sm:$0xff]
    %v144 = vld [vmem:[#allocation8 + $0x160] sm:$0xff]
    %v145 = vld [vmem:[#allocation8 + $0x168] sm:$0xff]
    %v146 = vld [vmem:[#allocation8 + $0x170] sm:$0xff]
    %v147 = vld [vmem:[#allocation8 + $0x178] sm:$0xff]
    %v148 = vld [vmem:[#allocation8 + $0x180] sm:$0xff]
    %v149 = vld [vmem:[#allocation8 + $0x188] sm:$0xff]
    %v150 = vld [vmem:[#allocation8 + $0x190] sm:$0xff]
    %v151 = vld [vmem:[#allocation8 + $0x198] sm:$0xff]
    %v152 = vld [vmem:[#allocation8 + $0x1a0] sm:$0xff]
    %v153 = vld [vmem:[#allocation8 + $0x1a8] sm:$0xff]
    %v154 = vld [vmem:[#allocation8 + $0x1b0] sm:$0xff]
    %v155 = vld [vmem:[#allocation8 + $0x1b8] sm:$0xff]
    %v156 = vld [vmem:[#allocation8 + $0x1c0] sm:$0xff]
    %v157 = vld [vmem:[#allocation8 + $0x1c8] sm:$0xff]
    %v158 = vld [vmem:[#allocation8 + $0x1d0] sm:$0xff]
    %v159 = vld [vmem:[#allocation8 + $0x1d8] sm:$0xff]
    %v160 = vld [vmem:[#allocation8 + $0x1e0] sm:$0xff]
    %v161 = vld [vmem:[#allocation8 + $0x1e8] sm:$0xff]
    %v162 = vld [vmem:[#allocation8 + $0x1f0] sm:$0xff]
    %v163 = vld [vmem:[#allocation8 + $0x1f8] sm:$0xff]
    %v164 = vld [vmem:[%s5] sm:$0xf]
    %v166 = vlaneseq
    %v167 = vshrl.u32 %v166, 7
    %v168 = vsub.s32 0, %v167
    %v169 = vrot.slane %v164, %v168
    %v170 = vlaneseq
    %v171 = vshrl.u32 %v170, 7
    %v172 = vsub.s32 1, %v171
    %v173 = vrot.slane %v164, %v172
    %v174 = vlaneseq
    %v175 = vshrl.u32 %v174, 7
    %v176 = vsub.s32 2, %v175
    %v177 = vrot.slane %v164, %v176
    %v178 = vlaneseq
    %v179 = vshrl.u32 %v178, 7
    %v180 = vsub.s32 3, %v179
    %v181 = vrot.slane %v164, %v180
    %v187 = vunpack.c.l.b16 %v99
    %v188 = vunpack.c.h.b16 %v99
    %v189 = vpack.c.b16 %v187, %v187
    %v190 = vpack.c.b16 %v188, %v188
    %v257 = vunpack.c.l.b16 %v100
    %v258 = vunpack.c.h.b16 %v100
    %v259 = vunpack.c.l.b16 %v101
    %v260 = vunpack.c.h.b16 %v101
    %v261 = vunpack.c.l.b16 %v102
    %v262 = vunpack.c.h.b16 %v102
    %v263 = vunpack.c.l.b16 %v103
    %v264 = vunpack.c.h.b16 %v103
    %v265 = vunpack.c.l.b16 %v104
    %v266 = vunpack.c.h.b16 %v104
    %v267 = vunpack.c.l.b16 %v105
    %v268 = vunpack.c.h.b16 %v105
    %v269 = vunpack.c.l.b16 %v106
    %v270 = vunpack.c.h.b16 %v106
    %v271 = vunpack.c.l.b16 %v107
    %v272 = vunpack.c.h.b16 %v107
    %v273 = vunpack.c.l.b16 %v108
    %v274 = vunpack.c.h.b16 %v108
    %v275 = vunpack.c.l.b16 %v109
    %v276 = vunpack.c.h.b16 %v109
    %v277 = vunpack.c.l.b16 %v110
    %v278 = vunpack.c.h.b16 %v110
    %v279 = vunpack.c.l.b16 %v111
    %v280 = vunpack.c.h.b16 %v111
    %v281 = vunpack.c.l.b16 %v112
    %v282 = vunpack.c.h.b16 %v112
    %v283 = vunpack.c.l.b16 %v113
    %v284 = vunpack.c.h.b16 %v113
    %v285 = vunpack.c.l.b16 %v114
    %v286 = vunpack.c.h.b16 %v114
    %v287 = vunpack.c.l.b16 %v115
    %v288 = vunpack.c.h.b16 %v115
    %v289 = vunpack.c.l.b16 %v116
    %v290 = vunpack.c.h.b16 %v116
    %v291 = vunpack.c.l.b16 %v117
    %v292 = vunpack.c.h.b16 %v117
    %v293 = vunpack.c.l.b16 %v118
    %v294 = vunpack.c.h.b16 %v118
    %v295 = vunpack.c.l.b16 %v119
    %v296 = vunpack.c.h.b16 %v119
    %v297 = vunpack.c.l.b16 %v120
    %v298 = vunpack.c.h.b16 %v120
    %v299 = vunpack.c.l.b16 %v121
    %v300 = vunpack.c.h.b16 %v121
    %v301 = vunpack.c.l.b16 %v122
    %v302 = vunpack.c.h.b16 %v122
    %v303 = vunpack.c.l.b16 %v123
    %v304 = vunpack.c.h.b16 %v123
    %v305 = vunpack.c.l.b16 %v124
    %v306 = vunpack.c.h.b16 %v124
    %v307 = vunpack.c.l.b16 %v125
    %v308 = vunpack.c.h.b16 %v125
    %v309 = vunpack.c.l.b16 %v126
    %v310 = vunpack.c.h.b16 %v126
    %v311 = vunpack.c.l.b16 %v127
    %v312 = vunpack.c.h.b16 %v127
    %v313 = vunpack.c.l.b16 %v128
    %v314 = vunpack.c.h.b16 %v128
    %v315 = vunpack.c.l.b16 %v129
    %v316 = vunpack.c.h.b16 %v129
    %v317 = vunpack.c.l.b16 %v130
    %v318 = vunpack.c.h.b16 %v130
    %v319 = vunpack.c.l.b16 %v131
    %v320 = vunpack.c.h.b16 %v131
    %v321 = vunpack.c.l.b16 %v132
    %v322 = vunpack.c.h.b16 %v132
    %v323 = vunpack.c.l.b16 %v133
    %v324 = vunpack.c.h.b16 %v133
    %v325 = vunpack.c.l.b16 %v134
    %v326 = vunpack.c.h.b16 %v134
    %v327 = vunpack.c.l.b16 %v135
    %v328 = vunpack.c.h.b16 %v135
    %v329 = vunpack.c.l.b16 %v136
    %v330 = vunpack.c.h.b16 %v136
    %v331 = vunpack.c.l.b16 %v137
    %v332 = vunpack.c.h.b16 %v137
    %v333 = vunpack.c.l.b16 %v138
    %v334 = vunpack.c.h.b16 %v138
    %v335 = vunpack.c.l.b16 %v139
    %v336 = vunpack.c.h.b16 %v139
    %v337 = vunpack.c.l.b16 %v140
    %v338 = vunpack.c.h.b16 %v140
    %v339 = vunpack.c.l.b16 %v141
    %v340 = vunpack.c.h.b16 %v141
    %v341 = vunpack.c.l.b16 %v142
    %v342 = vunpack.c.h.b16 %v142
    %v343 = vunpack.c.l.b16 %v143
    %v344 = vunpack.c.h.b16 %v143
    %v345 = vunpack.c.l.b16 %v144
    %v346 = vunpack.c.h.b16 %v144
    %v347 = vunpack.c.l.b16 %v145
    %v348 = vunpack.c.h.b16 %v145
    %v349 = vunpack.c.l.b16 %v146
    %v350 = vunpack.c.h.b16 %v146
    %v351 = vunpack.c.l.b16 %v147
    %v352 = vunpack.c.h.b16 %v147
    %v353 = vunpack.c.l.b16 %v148
    %v354 = vunpack.c.h.b16 %v148
    %v355 = vunpack.c.l.b16 %v149
    %v356 = vunpack.c.h.b16 %v149
    %v357 = vunpack.c.l.b16 %v150
    %v358 = vunpack.c.h.b16 %v150
    %v359 = vunpack.c.l.b16 %v151
    %v360 = vunpack.c.h.b16 %v151
    %v361 = vunpack.c.l.b16 %v152
    %v362 = vunpack.c.h.b16 %v152
    %v363 = vunpack.c.l.b16 %v153
    %v364 = vunpack.c.h.b16 %v153
    %v365 = vunpack.c.l.b16 %v154
    %v366 = vunpack.c.h.b16 %v154
    %v367 = vunpack.c.l.b16 %v155
    %v368 = vunpack.c.h.b16 %v155
    %v369 = vunpack.c.l.b16 %v156
    %v370 = vunpack.c.h.b16 %v156
    %v371 = vunpack.c.l.b16 %v157
    %v372 = vunpack.c.h.b16 %v157
    %v373 = vunpack.c.l.b16 %v158
    %v374 = vunpack.c.h.b16 %v158
    %v375 = vunpack.c.l.b16 %v159
    %v376 = vunpack.c.h.b16 %v159
    %v377 = vunpack.c.l.b16 %v160
    %v378 = vunpack.c.h.b16 %v160
    %v379 = vunpack.c.l.b16 %v161
    %v380 = vunpack.c.h.b16 %v161
    %v381 = vunpack.c.l.b16 %v162
    %v382 = vunpack.c.h.b16 %v162
    %v383 = vunpack.c.l.b16 %v163
    %v384 = vunpack.c.h.b16 %v163
    %v385 = vpack.c.b16 %v261, %v257
    %v386 = vpack.c.b16 %v262, %v258
    %v387 = vpack.c.b16 %v263, %v259
    %v388 = vpack.c.b16 %v264, %v260
    %v389 = vpack.c.b16 %v269, %v265
    %v390 = vpack.c.b16 %v270, %v266
    %v391 = vpack.c.b16 %v271, %v267
    %v392 = vpack.c.b16 %v272, %v268
    %v393 = vpack.c.b16 %v277, %v273
    %v394 = vpack.c.b16 %v278, %v274
    %v395 = vpack.c.b16 %v279, %v275
    %v396 = vpack.c.b16 %v280, %v276
    %v397 = vpack.c.b16 %v285, %v281
    %v398 = vpack.c.b16 %v286, %v282
    %v399 = vpack.c.b16 %v287, %v283
    %v400 = vpack.c.b16 %v288, %v284
    %v401 = vpack.c.b16 %v293, %v289
    %v402 = vpack.c.b16 %v294, %v290
    %v403 = vpack.c.b16 %v295, %v291
    %v404 = vpack.c.b16 %v296, %v292
    %v405 = vpack.c.b16 %v301, %v297
    %v406 = vpack.c.b16 %v302, %v298
    %v407 = vpack.c.b16 %v303, %v299
    %v408 = vpack.c.b16 %v304, %v300
    %v409 = vpack.c.b16 %v309, %v305
    %v410 = vpack.c.b16 %v310, %v306
    %v411 = vpack.c.b16 %v311, %v307
    %v412 = vpack.c.b16 %v312, %v308
    %v413 = vpack.c.b16 %v317, %v313
    %v414 = vpack.c.b16 %v318, %v314
    %v415 = vpack.c.b16 %v319, %v315
    %v416 = vpack.c.b16 %v320, %v316
    %v417 = vpack.c.b16 %v325, %v321
    %v418 = vpack.c.b16 %v326, %v322
    %v419 = vpack.c.b16 %v327, %v323
    %v420 = vpack.c.b16 %v328, %v324
    %v421 = vpack.c.b16 %v333, %v329
    %v422 = vpack.c.b16 %v334, %v330
    %v423 = vpack.c.b16 %v335, %v331
    %v424 = vpack.c.b16 %v336, %v332
    %v425 = vpack.c.b16 %v341, %v337
    %v426 = vpack.c.b16 %v342, %v338
    %v427 = vpack.c.b16 %v343, %v339
    %v428 = vpack.c.b16 %v344, %v340
    %v429 = vpack.c.b16 %v349, %v345
    %v430 = vpack.c.b16 %v350, %v346
    %v431 = vpack.c.b16 %v351, %v347
    %v432 = vpack.c.b16 %v352, %v348
    %v433 = vpack.c.b16 %v357, %v353
    %v434 = vpack.c.b16 %v358, %v354
    %v435 = vpack.c.b16 %v359, %v355
    %v436 = vpack.c.b16 %v360, %v356
    %v437 = vpack.c.b16 %v365, %v361
    %v438 = vpack.c.b16 %v366, %v362
    %v439 = vpack.c.b16 %v367, %v363
    %v440 = vpack.c.b16 %v368, %v364
    %v441 = vpack.c.b16 %v373, %v369
    %v442 = vpack.c.b16 %v374, %v370
    %v443 = vpack.c.b16 %v375, %v371
    %v444 = vpack.c.b16 %v376, %v372
    %v445 = vpack.c.b16 %v381, %v377
    %v446 = vpack.c.b16 %v382, %v378
    %v447 = vpack.c.b16 %v383, %v379
    %v448 = vpack.c.b16 %v384, %v380
    %513 = vmatprep.subr.bf16.mxu0 %v386
    %514 = vmatpush1.bf16.msra.mxu0 %v385
    %515 = vmatprep.subr.bf16.mxu0 %v390
    %516 = vmatpush1.bf16.msra.mxu0 %v389
    %517 = vmatprep.subr.bf16.mxu0 %v394
    %518 = vmatpush1.bf16.msra.mxu0 %v393
    %519 = vmatprep.subr.bf16.mxu0 %v398
    %520 = vmatpush1.bf16.msra.mxu0 %v397
    %521 = vmatprep.subr.bf16.mxu0 %v402
    %522 = vmatpush1.bf16.msra.mxu0 %v401
    %523 = vmatprep.subr.bf16.mxu0 %v406
    %524 = vmatpush1.bf16.msra.mxu0 %v405
    %525 = vmatprep.subr.bf16.mxu0 %v410
    %526 = vmatpush1.bf16.msra.mxu0 %v409
    %527 = vmatprep.subr.bf16.mxu0 %v414
    %528 = vmatpush1.bf16.msra.mxu0 %v413
    %529 = vmatprep.subr.bf16.mxu0 %v418
    %530 = vmatpush1.bf16.msra.mxu0 %v417
    %531 = vmatprep.subr.bf16.mxu0 %v422
    %532 = vmatpush1.bf16.msra.mxu0 %v421
    %533 = vmatprep.subr.bf16.mxu0 %v426
    %534 = vmatpush1.bf16.msra.mxu0 %v425
    %535 = vmatprep.subr.bf16.mxu0 %v430
    %536 = vmatpush1.bf16.msra.mxu0 %v429
    %537 = vmatprep.subr.bf16.mxu0 %v434
    %538 = vmatpush1.bf16.msra.mxu0 %v433
    %539 = vmatprep.subr.bf16.mxu0 %v438
    %540 = vmatpush1.bf16.msra.mxu0 %v437
    %541 = vmatprep.subr.bf16.mxu0 %v442
    %542 = vmatpush1.bf16.msra.mxu0 %v441
    %543 = vmatprep.subr.bf16.mxu0 %v446
    %544 = vmatpush1.bf16.msra.mxu0 %v445
    %545 = vmatprep.mubr.bf16.mxu0 %v190
    %546 = vmatmul.mubr.bf16.gmra.mrb[0].mxu0 %v189
    %v547 = vpop.f32.mrb[0].mxu0
    %v548 = vadd.f32 %v169, %v547
    %v549 = vpop.f32.mrb[0].mxu0
    %v550 = vadd.f32 %v173, %v549
    %v551 = vpop.f32.mrb[0].mxu0
    %v552 = vpop.f32.mrb[0].mxu0
    %553 = vdwg.mxu0
    %554 = vmatprep.subr.bf16.mxu0 %v388
    %555 = vmatpush1.bf16.msra.mxu0 %v387
    %556 = vmatprep.subr.bf16.mxu0 %v392
    %557 = vmatpush1.bf16.msra.mxu0 %v391
    %558 = vmatprep.subr.bf16.mxu0 %v396
    %559 = vmatpush1.bf16.msra.mxu0 %v395
    %560 = vmatprep.subr.bf16.mxu0 %v400
    %561 = vmatpush1.bf16.msra.mxu0 %v399
    %562 = vmatprep.subr.bf16.mxu0 %v404
    %563 = vmatpush1.bf16.msra.mxu0 %v403
    %564 = vmatprep.subr.bf16.mxu0 %v408
    %565 = vmatpush1.bf16.msra.mxu0 %v407
    %566 = vmatprep.subr.bf16.mxu0 %v412
    %567 = vmatpush1.bf16.msra.mxu0 %v411
    %568 = vmatprep.subr.bf16.mxu0 %v416
    %569 = vmatpush1.bf16.msra.mxu0 %v415
    %570 = vmatprep.subr.bf16.mxu0 %v420
    %571 = vmatpush1.bf16.msra.mxu0 %v419
    %572 = vmatprep.subr.bf16.mxu0 %v424
    %573 = vmatpush1.bf16.msra.mxu0 %v423
    %574 = vmatprep.subr.bf16.mxu0 %v428
    %575 = vmatpush1.bf16.msra.mxu0 %v427
    %576 = vmatprep.subr.bf16.mxu0 %v432
    %577 = vmatpush1.bf16.msra.mxu0 %v431
    %578 = vmatprep.subr.bf16.mxu0 %v436
    %579 = vmatpush1.bf16.msra.mxu0 %v435
    %580 = vmatprep.subr.bf16.mxu0 %v440
    %581 = vmatpush1.bf16.msra.mxu0 %v439
    %582 = vmatprep.subr.bf16.mxu0 %v444
    %583 = vmatpush1.bf16.msra.mxu0 %v443
    %584 = vmatprep.subr.bf16.mxu0 %v448
    %585 = vmatpush1.bf16.msra.mxu0 %v447
    %586 = vmatprep.mubr.bf16.mxu0 %v190
    %587 = vmatmul.mubr.bf16.gmra.mrb[0].mxu0 %v189
    %v588 = vpop.f32.mrb[0].mxu0
    %v589 = vadd.f32 %v177, %v588
    %v590 = vpop.f32.mrb[0].mxu0
    %v591 = vadd.f32 %v181, %v590
    %v592 = vpop.f32.mrb[0].mxu0
    %v593 = vpop.f32.mrb[0].mxu0
    %594 = vdwg.mxu0
    %v595 = vmax.f32 %v548, 0.0
    %v596 = vmax.f32 %v550, 0.0
    %v597 = vmax.f32 %v589, 0.0
    %v598 = vmax.f32 %v591, 0.0
    %v599 = vpack.c.bf16 %v595, %v595
    %v600 = vpack.c.bf16 %v596, %v596
    %v601 = vpack.c.bf16 %v597, %v597
    %v602 = vpack.c.bf16 %v598, %v598
    %v603 = vld [vmem:[#allocation10] sm:$0xf]
    %v604 = vld [vmem:[#allocation10 + $0x4] sm:$0xf]
    %v605 = vld [vmem:[#allocation10 + $0x8] sm:$0xf]
    %v606 = vld [vmem:[#allocation10 + $0xc] sm:$0xf]
    %v607 = vld [vmem:[#allocation10 + $0x10] sm:$0xf]
    %v608 = vld [vmem:[#allocation10 + $0x14] sm:$0xf]
    %v609 = vld [vmem:[#allocation10 + $0x18] sm:$0xf]
    %v610 = vld [vmem:[#allocation10 + $0x1c] sm:$0xf]
    %v611 = vld [vmem:[#allocation10 + $0x20] sm:$0xf]
    %v612 = vld [vmem:[#allocation10 + $0x24] sm:$0xf]
    %v613 = vld [vmem:[#allocation10 + $0x28] sm:$0xf]
    %v614 = vld [vmem:[#allocation10 + $0x2c] sm:$0xf]
    %v615 = vld [vmem:[#allocation10 + $0x30] sm:$0xf]
    %v616 = vld [vmem:[#allocation10 + $0x34] sm:$0xf]
    %v617 = vld [vmem:[#allocation10 + $0x38] sm:$0xf]
    %v618 = vld [vmem:[#allocation10 + $0x3c] sm:$0xf]
    %v619 = vld [vmem:[#allocation10 + $0x40] sm:$0xf]
    %v620 = vld [vmem:[#allocation10 + $0x44] sm:$0xf]
    %v621 = vld [vmem:[#allocation10 + $0x48] sm:$0xf]
    %v622 = vld [vmem:[#allocation10 + $0x4c] sm:$0xf]
    %v623 = vld [vmem:[#allocation10 + $0x50] sm:$0xf]
    %v624 = vld [vmem:[#allocation10 + $0x54] sm:$0xf]
    %v625 = vld [vmem:[#allocation10 + $0x58] sm:$0xf]
    %v626 = vld [vmem:[#allocation10 + $0x5c] sm:$0xf]
    %v627 = vld [vmem:[#allocation10 + $0x60] sm:$0xf]
    %v628 = vld [vmem:[#allocation10 + $0x64] sm:$0xf]
    %v629 = vld [vmem:[#allocation10 + $0x68] sm:$0xf]
    %v630 = vld [vmem:[#allocation10 + $0x6c] sm:$0xf]
    %v631 = vld [vmem:[#allocation10 + $0x70] sm:$0xf]
    %v632 = vld [vmem:[#allocation10 + $0x74] sm:$0xf]
    %v633 = vld [vmem:[#allocation10 + $0x78] sm:$0xf]
    %v634 = vld [vmem:[#allocation10 + $0x7c] sm:$0xf]
    %v635 = vld [vmem:[#allocation10 + $0x80] sm:$0xf]
    %v636 = vld [vmem:[#allocation10 + $0x84] sm:$0xf]
    %v637 = vld [vmem:[#allocation10 + $0x88] sm:$0xf]
    %v638 = vld [vmem:[#allocation10 + $0x8c] sm:$0xf]
    %v639 = vld [vmem:[#allocation10 + $0x90] sm:$0xf]
    %v640 = vld [vmem:[#allocation10 + $0x94] sm:$0xf]
    %v641 = vld [vmem:[#allocation10 + $0x98] sm:$0xf]
    %v642 = vld [vmem:[#allocation10 + $0x9c] sm:$0xf]
    %v643 = vld [vmem:[#allocation10 + $0xa0] sm:$0xf]
    %v644 = vld [vmem:[#allocation10 + $0xa4] sm:$0xf]
    %v645 = vld [vmem:[#allocation10 + $0xa8] sm:$0xf]
    %v646 = vld [vmem:[#allocation10 + $0xac] sm:$0xf]
    %v647 = vld [vmem:[#allocation10 + $0xb0] sm:$0xf]
    %v648 = vld [vmem:[#allocation10 + $0xb4] sm:$0xf]
    %v649 = vld [vmem:[#allocation10 + $0xb8] sm:$0xf]
    %v650 = vld [vmem:[#allocation10 + $0xbc] sm:$0xf]
    %v651 = vld [vmem:[#allocation10 + $0xc0] sm:$0xf]
    %v652 = vld [vmem:[#allocation10 + $0xc4] sm:$0xf]
    %v653 = vld [vmem:[#allocation10 + $0xc8] sm:$0xf]
    %v654 = vld [vmem:[#allocation10 + $0xcc] sm:$0xf]
    %v655 = vld [vmem:[#allocation10 + $0xd0] sm:$0xf]
    %v656 = vld [vmem:[#allocation10 + $0xd4] sm:$0xf]
    %v657 = vld [vmem:[#allocation10 + $0xd8] sm:$0xf]
    %v658 = vld [vmem:[#allocation10 + $0xdc] sm:$0xf]
    %v659 = vld [vmem:[#allocation10 + $0xe0] sm:$0xf]
    %v660 = vld [vmem:[#allocation10 + $0xe4] sm:$0xf]
    %v661 = vld [vmem:[#allocation10 + $0xe8] sm:$0xf]
    %v662 = vld [vmem:[#allocation10 + $0xec] sm:$0xf]
    %v663 = vld [vmem:[#allocation10 + $0xf0] sm:$0xf]
    %v664 = vld [vmem:[#allocation10 + $0xf4] sm:$0xf]
    %v665 = vld [vmem:[#allocation10 + $0xf8] sm:$0xf]
    %v666 = vld [vmem:[#allocation10 + $0xfc] sm:$0xf]
    %v667 = vld [vmem:[%s7] sm:$0x1]
    %v669 = vlaneseq
    %v670 = vshrl.u32 %v669, 7
    %v671 = vsub.s32 0, %v670
    %v672 = vrot.slane %v667, %v671
    %v738 = vunpack.c.l.b16 %v603
    %v739 = vunpack.c.l.b16 %v604
    %v740 = vunpack.c.l.b16 %v605
    %v741 = vunpack.c.l.b16 %v606
    %v742 = vunpack.c.l.b16 %v607
    %v743 = vunpack.c.l.b16 %v608
    %v744 = vunpack.c.l.b16 %v609
    %v745 = vunpack.c.l.b16 %v610
    %v746 = vunpack.c.l.b16 %v611
    %v747 = vunpack.c.l.b16 %v612
    %v748 = vunpack.c.l.b16 %v613
    %v749 = vunpack.c.l.b16 %v614
    %v750 = vunpack.c.l.b16 %v615
    %v751 = vunpack.c.l.b16 %v616
    %v752 = vunpack.c.l.b16 %v617
    %v753 = vunpack.c.l.b16 %v618
    %v754 = vunpack.c.l.b16 %v619
    %v755 = vunpack.c.l.b16 %v620
    %v756 = vunpack.c.l.b16 %v621
    %v757 = vunpack.c.l.b16 %v622
    %v758 = vunpack.c.l.b16 %v623
    %v759 = vunpack.c.l.b16 %v624
    %v760 = vunpack.c.l.b16 %v625
    %v761 = vunpack.c.l.b16 %v626
    %v762 = vunpack.c.l.b16 %v627
    %v763 = vunpack.c.l.b16 %v628
    %v764 = vunpack.c.l.b16 %v629
    %v765 = vunpack.c.l.b16 %v630
    %v766 = vunpack.c.l.b16 %v631
    %v767 = vunpack.c.l.b16 %v632
    %v768 = vunpack.c.l.b16 %v633
    %v769 = vunpack.c.l.b16 %v634
    %v770 = vunpack.c.l.b16 %v635
    %v771 = vunpack.c.l.b16 %v636
    %v772 = vunpack.c.l.b16 %v637
    %v773 = vunpack.c.l.b16 %v638
    %v774 = vunpack.c.l.b16 %v639
    %v775 = vunpack.c.l.b16 %v640
    %v776 = vunpack.c.l.b16 %v641
    %v777 = vunpack.c.l.b16 %v642
    %v778 = vunpack.c.l.b16 %v643
    %v779 = vunpack.c.l.b16 %v644
    %v780 = vunpack.c.l.b16 %v645
    %v781 = vunpack.c.l.b16 %v646
    %v782 = vunpack.c.l.b16 %v647
    %v783 = vunpack.c.l.b16 %v648
    %v784 = vunpack.c.l.b16 %v649
    %v785 = vunpack.c.l.b16 %v650
    %v786 = vunpack.c.l.b16 %v651
    %v787 = vunpack.c.l.b16 %v652
    %v788 = vunpack.c.l.b16 %v653
    %v789 = vunpack.c.l.b16 %v654
    %v790 = vunpack.c.l.b16 %v655
    %v791 = vunpack.c.l.b16 %v656
    %v792 = vunpack.c.l.b16 %v657
    %v793 = vunpack.c.l.b16 %v658
    %v794 = vunpack.c.l.b16 %v659
    %v795 = vunpack.c.l.b16 %v660
    %v796 = vunpack.c.l.b16 %v661
    %v797 = vunpack.c.l.b16 %v662
    %v798 = vunpack.c.l.b16 %v663
    %v799 = vunpack.c.l.b16 %v664
    %v800 = vunpack.c.l.b16 %v665
    %v801 = vunpack.c.l.b16 %v666
    %v802 = vpack.c.b16 %v739, %v738
    %v803 = vpack.c.b16 %v741, %v740
    %v804 = vpack.c.b16 %v743, %v742
    %v805 = vpack.c.b16 %v745, %v744
    %v806 = vpack.c.b16 %v747, %v746
    %v807 = vpack.c.b16 %v749, %v748
    %v808 = vpack.c.b16 %v751, %v750
    %v809 = vpack.c.b16 %v753, %v752
    %v810 = vpack.c.b16 %v755, %v754
    %v811 = vpack.c.b16 %v757, %v756
    %v812 = vpack.c.b16 %v759, %v758
    %v813 = vpack.c.b16 %v761, %v760
    %v814 = vpack.c.b16 %v763, %v762
    %v815 = vpack.c.b16 %v765, %v764
    %v816 = vpack.c.b16 %v767, %v766
    %v817 = vpack.c.b16 %v769, %v768
    %v818 = vpack.c.b16 %v771, %v770
    %v819 = vpack.c.b16 %v773, %v772
    %v820 = vpack.c.b16 %v775, %v774
    %v821 = vpack.c.b16 %v777, %v776
    %v822 = vpack.c.b16 %v779, %v778
    %v823 = vpack.c.b16 %v781, %v780
    %v824 = vpack.c.b16 %v783, %v782
    %v825 = vpack.c.b16 %v785, %v784
    %v826 = vpack.c.b16 %v787, %v786
    %v827 = vpack.c.b16 %v789, %v788
    %v828 = vpack.c.b16 %v791, %v790
    %v829 = vpack.c.b16 %v793, %v792
    %v830 = vpack.c.b16 %v795, %v794
    %v831 = vpack.c.b16 %v797, %v796
    %v832 = vpack.c.b16 %v799, %v798
    %v833 = vpack.c.b16 %v801, %v800
    %866 = vmatprep.subr.bf16.mxu0 0
    %867 = vmatpush1.bf16.msra.mxu0 %v802
    %868 = vmatprep.subr.bf16.mxu0 0
    %869 = vmatpush1.bf16.msra.mxu0 %v803
    %870 = vmatprep.subr.bf16.mxu0 0
    %871 = vmatpush1.bf16.msra.mxu0 %v804
    %872 = vmatprep.subr.bf16.mxu0 0
    %873 = vmatpush1.bf16.msra.mxu0 %v805
    %874 = vmatprep.subr.bf16.mxu0 0
    %875 = vmatpush1.bf16.msra.mxu0 %v806
    %876 = vmatprep.subr.bf16.mxu0 0
    %877 = vmatpush1.bf16.msra.mxu0 %v807
    %878 = vmatprep.subr.bf16.mxu0 0
    %879 = vmatpush1.bf16.msra.mxu0 %v808
    %880 = vmatprep.subr.bf16.mxu0 0
    %881 = vmatpush1.bf16.msra.mxu0 %v809
    %882 = vmatprep.subr.bf16.mxu0 0
    %883 = vmatpush1.bf16.msra.mxu0 %v810
    %884 = vmatprep.subr.bf16.mxu0 0
    %885 = vmatpush1.bf16.msra.mxu0 %v811
    %886 = vmatprep.subr.bf16.mxu0 0
    %887 = vmatpush1.bf16.msra.mxu0 %v812
    %888 = vmatprep.subr.bf16.mxu0 0
    %889 = vmatpush1.bf16.msra.mxu0 %v813
    %890 = vmatprep.subr.bf16.mxu0 0
    %891 = vmatpush1.bf16.msra.mxu0 %v814
    %892 = vmatprep.subr.bf16.mxu0 0
    %893 = vmatpush1.bf16.msra.mxu0 %v815
    %894 = vmatprep.subr.bf16.mxu0 0
    %895 = vmatpush1.bf16.msra.mxu0 %v816
    %896 = vmatprep.subr.bf16.mxu0 0
    %897 = vmatpush1.bf16.msra.mxu0 %v817
    %898 = vmatprep.mubr.bf16.mxu0 %v600
    %899 = vmatmul.mubr.bf16.gmra.mrb[0].mxu0 %v599
    %v900 = vpop.f32.mrb[0].mxu0
    %v901 = vadd.f32 %v672, %v900
    %v902 = vpop.f32.mrb[0].mxu0
    %v903 = vpop.f32.mrb[0].mxu0
    %v904 = vpop.f32.mrb[0].mxu0
    %905 = vdwg.mxu0
    %906 = vmatprep.subr.bf16.mxu0 0
    %907 = vmatpush1.bf16.msra.mxu0 %v818
    %908 = vmatprep.subr.bf16.mxu0 0
    %909 = vmatpush1.bf16.msra.mxu0 %v819
    %910 = vmatprep.subr.bf16.mxu0 0
    %911 = vmatpush1.bf16.msra.mxu0 %v820
    %912 = vmatprep.subr.bf16.mxu0 0
    %913 = vmatpush1.bf16.msra.mxu0 %v821
    %914 = vmatprep.subr.bf16.mxu0 0
    %915 = vmatpush1.bf16.msra.mxu0 %v822
    %916 = vmatprep.subr.bf16.mxu0 0
    %917 = vmatpush1.bf16.msra.mxu0 %v823
    %918 = vmatprep.subr.bf16.mxu0 0
    %919 = vmatpush1.bf16.msra.mxu0 %v824
    %920 = vmatprep.subr.bf16.mxu0 0
    %921 = vmatpush1.bf16.msra.mxu0 %v825
    %922 = vmatprep.subr.bf16.mxu0 0
    %923 = vmatpush1.bf16.msra.mxu0 %v826
    %924 = vmatprep.subr.bf16.mxu0 0
    %925 = vmatpush1.bf16.msra.mxu0 %v827
    %926 = vmatprep.subr.bf16.mxu0 0
    %927 = vmatpush1.bf16.msra.mxu0 %v828
    %928 = vmatprep.subr.bf16.mxu0 0
    %929 = vmatpush1.bf16.msra.mxu0 %v829
    %930 = vmatprep.subr.bf16.mxu0 0
    %931 = vmatpush1.bf16.msra.mxu0 %v830
    %932 = vmatprep.subr.bf16.mxu0 0
    %933 = vmatpush1.bf16.msra.mxu0 %v831
    %934 = vmatprep.subr.bf16.mxu0 0
    %935 = vmatpush1.bf16.msra.mxu0 %v832
    %936 = vmatprep.subr.bf16.mxu0 0
    %937 = vmatpush1.bf16.msra.mxu0 %v833
    %938 = vmatprep.mubr.bf16.mxu0 %v602
    %939 = vmatmul.mubr.bf16.gmra.mrb[0].mxu0 %v601
    %v940 = vpop.f32.mrb[0].mxu0
    %v941 = vadd.f32 %v901, %v940
    %v942 = vpop.f32.mrb[0].mxu0
    %v943 = vpop.f32.mrb[0].mxu0
    %v944 = vpop.f32.mrb[0].mxu0
    %945 = vdwg.mxu0
    %946 = vst [vmem:[#allocation11] sm:$0xff] %v941
    // Predicated region
    $region54: #{tpu_custom_call.1} parent=1 // pred_check
      _
    $region55: #{tpu_custom_call.1} parent=1 // pred_check_branch
      %948 = sbr.rel (0) target = $region57
    $region56: #{tpu_custom_call.1} parent=1 // pred_region
      %s950 = ssub.s32 128, 128
      %951 = vsyncadd [#allocation4], %s950
      %s953 = sshll.u32 [#allocation11], 4
      %s954 = int_to_ptr.vmem [resolvable:$true] %s953
      %956 = dma.vmem_to_hbm [thread:$0]  %s954, 128, %s8, [#allocation4]
    $region57: #{tpu_custom_call.1} parent=1 // pred_fallthru
      _
    // Predicated region
    $region58: #{tpu_custom_call.1} parent=1 // pred_check
      _
    $region59: #{tpu_custom_call.1} parent=1 // pred_check_branch
      %958 = sbr.rel (0) target = $region61
    $region60: #{tpu_custom_call.1} parent=1 // pred_region
      %959 = dma.done [#allocation4], 128
    $region61: #{tpu_custom_call.1} parent=1 // pred_fallthru
      _
    %960 = vsyncpa [#allocation3], 1
    %961 = vsyncpa [#allocation6], 1
    %962 = vsyncpa [#allocation9], 1
    %963 = vsyncpa [#allocation4], 1

</llo_original>
